<compile_context>
chip_gen: v7x
topology: tpu7x:2x2x1
jax: 0.10.0
libtpu: 0.0.40
codegen_flags: <defaults>
</compile_context>

<pallas_src>
import jax
import jax.numpy as jnp
from jax import lax
from jax.experimental import pallas as pl
from jax.experimental.pallas import tpu as pltpu

# ----------------------------- configuration --------------------------------
B = 8          # batch
C = 4          # image channels
H = W = 16     # spatial
HW = H * W
VF = 32        # backbone.visual_features
HS = 32        # CFG.g_embedding_features (hidden_size)
NC = 16        # CFG.n_class
HANDCRAFT = "all"   # -> projection input is 3 * VF

OUT_LANES = 128            # lane-dense packed output: [pseudo|mapped|output|pad]
OUT_USED = NC + HS + NC    # 64 useful lanes

# --------- frozen-parameter slab layout (one lane-padded f32 array) ----------
# Every block starts at lane 0 and at an 8-aligned row, so all kernel-side
# reads are cheap static slices of (8,128)-tiled VMEM.
SLAB_LANES = 128
R_W1 = 0                    # w1            (C, VF)
R_BIAS = 8                  # 6 bias rows   (one bias per row, lane 0)
R_WVP = 16                  # [wp1_a | wc]  (VF, 2*HS + NC)   N-packed
R_WP1B = R_WVP + VF         # wp1_b         (VF, 2*HS)
R_WP1C = R_WP1B + VF        # wp1_c         (VF, 2*HS)
R_WP2 = R_WP1C + VF         # wp2           (2*HS, HS)
R_WATTC = R_WP2 + 2 * HS    # watt_c        (HS, HS)
R_WATTV = R_WATTC + HS      # watt_v        (HS, HS)
R_WCLS = R_WATTV + HS       # wcls          (HS, NC)
SLAB_ROWS = R_WCLS + HS     # 272 rows -> 136 KiB f32

_VMEM_SPEC = pl.BlockSpec(memory_space=pltpu.MemorySpace.VMEM)


# ----------------------------- fused Pallas kernel ---------------------------
def _fused_kernel(x3_ref, g_ref, slab_ref, out_ref):
    bsz = x3_ref.shape[0] // 3

    # ---- frozen backbone on the stacked (3B, C*H*W) input -------------------
    x3 = x3_ref[...]
    # Spatial mean-pool as C aligned lane-range reductions (offsets are
    # multiples of 128, XLU has slack).  Avoids the 128 KiB folded-pool weight.
    pooled = jnp.concatenate(
        [jnp.sum(x3[:, c * HW:(c + 1) * HW], axis=-1, keepdims=True)
         for c in range(C)], axis=-1) * (1.0 / float(HW))             # (3B, C)

    # One aligned (8,128) load for all biases, then static value slices.
    bias_blk = slab_ref[R_BIAS:R_BIAS + 8, :]
    b1 = bias_blk[0:1, 0:VF]
    bc = bias_blk[1:2, 0:NC]
    bp1 = bias_blk[2:3, 0:2 * HS]
    bp2 = bias_blk[3:4, 0:HS]
    batt = bias_blk[4:5, 0:HS]
    bcls = bias_blk[5:6, 0:NC]

    w1 = slab_ref[R_W1:R_W1 + C, 0:VF]                                # (C, VF)
    vis3 = jnp.maximum(
        jnp.dot(pooled, w1, preferred_element_type=jnp.float32) + b1, 0.0)  # (3B, VF)

    vis_v = vis3[0:bsz]              # x branch
    vis_c = vis3[bsz:2 * bsz]        # contour branch
    vis_t = vis3[2 * bsz:3 * bsz]    # texture branch

    # ---- pseudo classifier + projection layer 1 (N-packed split-matmul) -----
    w_vpack = slab_ref[R_WVP:R_WVP + VF, 0:2 * HS + NC]     # [wp1_a | wc]
    r_v = jnp.dot(vis_v, w_vpack,
                  preferred_element_type=jnp.float32)       # (B, 2*HS + NC)
    pseudo = r_v[:, 2 * HS:2 * HS + NC] + bc                # (B, NC)

    wp1_b = slab_ref[R_WP1B:R_WP1B + VF, 0:2 * HS]
    wp1_c = slab_ref[R_WP1C:R_WP1C + VF, 0:2 * HS]
    h1 = jnp.maximum(
        r_v[:, 0:2 * HS]
        + jnp.dot(vis_c, wp1_b, preferred_element_type=jnp.float32)
        + jnp.dot(vis_t, wp1_c, preferred_element_type=jnp.float32)
        + bp1, 0.0)                                         # (B, 2*HS)

    wp2 = slab_ref[R_WP2:R_WP2 + 2 * HS, 0:HS]
    mapped = jnp.maximum(
        jnp.dot(h1, wp2, preferred_element_type=jnp.float32) + bp2, 0.0)   # (B, HS)

    # ---- graph-attention head ------------------------------------------------
    cond = jnp.dot(pseudo, g_ref[...],
                   preferred_element_type=jnp.float32)      # (B, HS)

    # scores = mapped @ cond.T via dot_general (no transpose materialized)
    scores = lax.dot_general(mapped, cond, (((1,), (1,)), ((), ())),
                             preferred_element_type=jnp.float32)            # (B, B)
    m = jnp.max(scores, axis=-1, keepdims=True)
    e = jnp.exp(scores - m)
    # approx reciprocal runs on the EUP slot; flip to approx=False if the
    # allclose tolerance ever tightens.
    dist = e * pl.reciprocal(jnp.sum(e, axis=-1, keepdims=True), approx=True)

    context = jnp.dot(dist, mapped, preferred_element_type=jnp.float32)     # (B, HS)

    # attention_dense on concat([context, mapped]) == split-matmul sum
    watt_c = slab_ref[R_WATTC:R_WATTC + HS, 0:HS]
    watt_v = slab_ref[R_WATTV:R_WATTV + HS, 0:HS]
    att = jnp.tanh(
        jnp.dot(context, watt_c, preferred_element_type=jnp.float32)
        + jnp.dot(mapped, watt_v, preferred_element_type=jnp.float32)
        + batt)                                                             # (B, HS)

    wcls = slab_ref[R_WCLS:R_WCLS + HS, 0:NC]
    out = jnp.dot(att, wcls, preferred_element_type=jnp.float32) + bcls     # (B, NC)

    # lane-dense (B, 128) packed output -> single unmasked store
    pad = jnp.zeros((bsz, OUT_LANES - OUT_USED), dtype=jnp.float32)
    out_ref[...] = jnp.concatenate([pseudo, mapped, out, pad], axis=-1)


# --------------------------------- wrapper -----------------------------------
@jax.jit
def kg_model_forward(x, x_contour, x_texture, g_embedding, slab):
    bn = x.shape[0]
    # Stack the three branches -> one lane-dense LHS, one backbone matmul,
    # one input DMA instead of three.
    x3 = jnp.concatenate(
        [x.reshape(bn, -1), x_contour.reshape(bn, -1), x_texture.reshape(bn, -1)],
        axis=0)

    flops = (3 * bn * C * HW                         # spatial pooling adds
             + 2 * 3 * bn * C * VF                   # backbone matmul
             + 2 * bn * VF * (2 * HS + NC)           # [wp1_a | wc]
             + 2 * 2 * bn * VF * 2 * HS              # wp1_b, wp1_c
             + 2 * bn * 2 * HS * HS                  # wp2
             + 2 * bn * NC * HS                      # cond
             + 2 * bn * HS * bn                      # scores
             + 2 * bn * bn * HS                      # context
             + 2 * 2 * bn * HS * HS                  # attention dense
             + 2 * bn * HS * NC)                     # classifier
    bytes_accessed = 4 * (x3.size + g_embedding.size + slab.size + bn * OUT_LANES)
    transcendentals = bn * bn + bn * HS + bn         # exp + tanh + reciprocal

    packed = pl.pallas_call(
        _fused_kernel,
        out_shape=jax.ShapeDtypeStruct((bn, OUT_LANES), jnp.float32),
        in_specs=[_VMEM_SPEC, _VMEM_SPEC, _VMEM_SPEC],
        out_specs=_VMEM_SPEC,
        cost_estimate=pl.CostEstimate(flops=flops,
                                      transcendentals=transcendentals,
                                      bytes_accessed=bytes_accessed),
    )(x3, g_embedding, slab)

    pseudo = packed[:, :NC]
    mapped = packed[:, NC:NC + HS]
    output = packed[:, NC + HS:OUT_USED]
    return pseudo, mapped, output


# --------------------------- parameter construction --------------------------
def init_params(key):
    keys = jax.random.split(key, 12)
    scale = 0.05

    def rnd(k, shape):
        return scale * jax.random.normal(k, shape, dtype=jnp.float32)

    backbone = {
        "w1": rnd(keys[0], (C, VF)),
        "b1": rnd(keys[1], (1, VF)),
        "wc": rnd(keys[2], (VF, NC)),
        "bc": rnd(keys[3], (1, NC)),
    }
    vf_in = 3 * VF  # handcraft == 'all'
    head = {
        "wp1": rnd(keys[4], (vf_in, 2 * HS)),
        "bp1": rnd(keys[5], (1, 2 * HS)),
        "wp2": rnd(keys[6], (2 * HS, HS)),
        "bp2": rnd(keys[7], (1, HS)),
        # attention_dense: Linear(2*HS -> HS), split into [context | mapped]
        "watt_c": rnd(keys[8], (HS, HS)),
        "watt_v": rnd(keys[9], (HS, HS)),
        "batt": rnd(keys[10], (1, HS)),
        "wcls": rnd(keys[11], (HS, NC)),
        "bcls": jnp.zeros((1, NC), dtype=jnp.float32),
    }
    return {"backbone": backbone, "head": head}


def pack_params(params):
    """One-time host-side packing of the frozen weights into a single
    lane-padded (SLAB_ROWS, 128) f32 slab (weights are frozen in the original
    module, so this is done once)."""
    bb, hd = params["backbone"], params["head"]
    slab = jnp.zeros((SLAB_ROWS, SLAB_LANES), dtype=jnp.float32)
    slab = slab.at[R_W1:R_W1 + C, :VF].set(bb["w1"])
    slab = slab.at[R_BIAS + 0, :VF].set(bb["b1"][0])
    slab = slab.at[R_BIAS + 1, :NC].set(bb["bc"][0])
    slab = slab.at[R_BIAS + 2, :2 * HS].set(hd["bp1"][0])
    slab = slab.at[R_BIAS + 3, :HS].set(hd["bp2"][0])
    slab = slab.at[R_BIAS + 4, :HS].set(hd["batt"][0])
    slab = slab.at[R_BIAS + 5, :NC].set(hd["bcls"][0])
    wp1 = hd["wp1"]  # (3*VF, 2*HS), rows ordered [visual | contour | texture]
    slab = slab.at[R_WVP:R_WVP + VF, :2 * HS].set(wp1[:VF])                  # wp1_a
    slab = slab.at[R_WVP:R_WVP + VF, 2 * HS:2 * HS + NC].set(bb["wc"])       # | wc
    slab = slab.at[R_WP1B:R_WP1B + VF, :2 * HS].set(wp1[VF:2 * VF])          # wp1_b
    slab = slab.at[R_WP1C:R_WP1C + VF, :2 * HS].set(wp1[2 * VF:])            # wp1_c
    slab = slab.at[R_WP2:R_WP2 + 2 * HS, :HS].set(hd["wp2"])
    slab = slab.at[R_WATTC:R_WATTC + HS, :HS].set(hd["watt_c"])
    slab = slab.at[R_WATTV:R_WATTV + HS, :HS].set(hd["watt_v"])
    slab = slab.at[R_WCLS:R_WCLS + HS, :NC].set(hd["wcls"])
    return slab


# ------------------------------ pure-JAX reference ---------------------------
def reference_forward(x, x_contour, x_texture, g_embedding, params):
    bb, hd = params["backbone"], params["head"]

    def backbone(img):
        pooled = jnp.mean(img.reshape(img.shape[0], img.shape[1], -1), axis=-1)
        vis = jax.nn.relu(pooled @ bb["w1"] + bb["b1"])
        return vis, vis @ bb["wc"] + bb["bc"]

    visual, pseudo = backbone(x)
    contour, _ = backbone(x_contour)
    texture, _ = backbone(x_texture)
    vis_cat = jnp.concatenate([visual, contour, texture], axis=-1)
    h1 = jax.nn.relu(vis_cat @ hd["wp1"] + hd["bp1"])
    mapped = jax.nn.relu(h1 @ hd["wp2"] + hd["bp2"])
    cond = pseudo @ g_embedding
    dist = jax.nn.softmax(mapped @ cond.T, axis=-1)
    context = dist @ mapped
    att = jnp.tanh(context @ hd["watt_c"] + mapped @ hd["watt_v"] + hd["batt"])
    out = att @ hd["wcls"] + hd["bcls"]
    return pseudo, mapped, out


# ----------------------------------- main ------------------------------------
if __name__ == "__main__":
    key = jax.random.PRNGKey(0)
    k_x, k_c, k_t, k_g, k_p = jax.random.split(key, 5)

    x = jax.random.normal(k_x, (B, C, H, W), dtype=jnp.float32)
    x_contour = jax.random.normal(k_c, (B, C, H, W), dtype=jnp.float32)
    x_texture = jax.random.normal(k_t, (B, C, H, W), dtype=jnp.float32)
    g_embedding = jax.random.normal(k_g, (NC, HS), dtype=jnp.float32)

    params = init_params(k_p)
    slab = pack_params(params)

    pseudo, mapped, output = kg_model_forward(
        x, x_contour, x_texture, g_embedding, slab)
    jax.block_until_ready((pseudo, mapped, output))

    ref_pseudo, ref_mapped, ref_output = reference_forward(
        x, x_contour, x_texture, g_embedding, params)

    assert pseudo.shape == (B, NC) and mapped.shape == (B, HS) and output.shape == (B, NC)
    for got, ref in ((pseudo, ref_pseudo), (mapped, ref_mapped), (output, ref_output)):
        assert jnp.allclose(got, ref, rtol=1e-3, atol=1e-3), "mismatch vs reference"

    print("KERNEL_OK")
</pallas_src>

<mosaic_0001>
module attributes {stable_mosaic.version = 11 : i64} {
  func.func @_fused_kernel(%arg0: memref<24x1024xf32, #tpu.memory_space<vmem>>, %arg1: memref<16x32xf32, #tpu.memory_space<vmem>>, %arg2: memref<272x128xf32, #tpu.memory_space<vmem>>, %arg3: memref<8x128xf32, #tpu.memory_space<vmem>>) attributes {dimension_semantics = [], scalar_prefetch = 0 : i64, scratch_operands = 0 : i64, tpu.core_type = #tpu.core_type<tc>} {
    %c0 = arith.constant 0 : index
    %c0_0 = arith.constant 0 : index
    %0 = vector.load %arg0[%c0, %c0_0] : memref<24x1024xf32, #tpu.memory_space<vmem>>, vector<24x1024xf32>
    %1 = vector.extract_strided_slice %0 {offsets = [0, 0], sizes = [24, 256], strides = [1, 1]} : vector<24x1024xf32> to vector<24x256xf32>
    %cst = arith.constant dense<0.000000e+00> : vector<24xf32>
    %2 = vector.multi_reduction <add>, %1, %cst [1] : vector<24x256xf32> to vector<24xf32>
    %3 = vector.shape_cast %2 : vector<24xf32> to vector<24x1xf32>
    %4 = vector.extract_strided_slice %0 {offsets = [0, 256], sizes = [24, 256], strides = [1, 1]} : vector<24x1024xf32> to vector<24x256xf32>
    %cst_1 = arith.constant dense<0.000000e+00> : vector<24xf32>
    %5 = vector.multi_reduction <add>, %4, %cst_1 [1] : vector<24x256xf32> to vector<24xf32>
    %6 = vector.shape_cast %5 : vector<24xf32> to vector<24x1xf32>
    %7 = vector.extract_strided_slice %0 {offsets = [0, 512], sizes = [24, 256], strides = [1, 1]} : vector<24x1024xf32> to vector<24x256xf32>
    %cst_2 = arith.constant dense<0.000000e+00> : vector<24xf32>
    %8 = vector.multi_reduction <add>, %7, %cst_2 [1] : vector<24x256xf32> to vector<24xf32>
    %9 = vector.shape_cast %8 : vector<24xf32> to vector<24x1xf32>
    %10 = vector.extract_strided_slice %0 {offsets = [0, 768], sizes = [24, 256], strides = [1, 1]} : vector<24x1024xf32> to vector<24x256xf32>
    %cst_3 = arith.constant dense<0.000000e+00> : vector<24xf32>
    %11 = vector.multi_reduction <add>, %10, %cst_3 [1] : vector<24x256xf32> to vector<24xf32>
    %12 = vector.shape_cast %11 : vector<24xf32> to vector<24x1xf32>
    %13 = tpu.concatenate %3, %6, %9, %12 in 1 : vector<24x1xf32>, vector<24x1xf32>, vector<24x1xf32>, vector<24x1xf32> -> vector<24x4xf32>
    %cst_4 = arith.constant 3.906250e-03 : f32
    %14 = vector.broadcast %cst_4 : f32 to vector<24x4xf32>
    %15 = arith.mulf %13, %14 : vector<24x4xf32>
    %c8 = arith.constant 8 : index
    %c0_5 = arith.constant 0 : index
    %16 = vector.load %arg2[%c8, %c0_5] : memref<272x128xf32, #tpu.memory_space<vmem>>, vector<8x128xf32>
    %17 = vector.extract_strided_slice %16 {offsets = [0, 0], sizes = [1, 32], strides = [1, 1]} : vector<8x128xf32> to vector<1x32xf32>
    %18 = vector.extract_strided_slice %16 {offsets = [1, 0], sizes = [1, 16], strides = [1, 1]} : vector<8x128xf32> to vector<1x16xf32>
    %19 = vector.extract_strided_slice %16 {offsets = [2, 0], sizes = [1, 64], strides = [1, 1]} : vector<8x128xf32> to vector<1x64xf32>
    %20 = vector.extract_strided_slice %16 {offsets = [3, 0], sizes = [1, 32], strides = [1, 1]} : vector<8x128xf32> to vector<1x32xf32>
    %21 = vector.extract_strided_slice %16 {offsets = [4, 0], sizes = [1, 32], strides = [1, 1]} : vector<8x128xf32> to vector<1x32xf32>
    %22 = vector.extract_strided_slice %16 {offsets = [5, 0], sizes = [1, 16], strides = [1, 1]} : vector<8x128xf32> to vector<1x16xf32>
    %c0_6 = arith.constant 0 : index
    %c0_7 = arith.constant 0 : index
    %23 = vector.load %arg2[%c0_6, %c0_7] : memref<272x128xf32, #tpu.memory_space<vmem>>, vector<4x32xf32>
    %cst_8 = arith.constant dense<0.000000e+00> : vector<24x32xf32>
    %24 = tpu.matmul %15, %23, %cst_8 {dimension_numbers = #tpu.dot_dimension_numbers<[1], [0], [0], [1], [0, 0, 1, 1], [], []>} : vector<24x4xf32>, vector<4x32xf32>, vector<24x32xf32> -> vector<24x32xf32>
    %25 = vector.broadcast %17 : vector<1x32xf32> to vector<24x32xf32>
    %26 = arith.addf %24, %25 : vector<24x32xf32>
    %cst_9 = arith.constant 0.000000e+00 : f32
    %27 = vector.broadcast %cst_9 : f32 to vector<24x32xf32>
    %28 = arith.maximumf %26, %27 : vector<24x32xf32>
    %29 = vector.extract_strided_slice %28 {offsets = [0, 0], sizes = [8, 32], strides = [1, 1]} : vector<24x32xf32> to vector<8x32xf32>
    %30 = vector.extract_strided_slice %28 {offsets = [8, 0], sizes = [8, 32], strides = [1, 1]} : vector<24x32xf32> to vector<8x32xf32>
    %31 = vector.extract_strided_slice %28 {offsets = [16, 0], sizes = [8, 32], strides = [1, 1]} : vector<24x32xf32> to vector<8x32xf32>
    %c16 = arith.constant 16 : index
    %c0_10 = arith.constant 0 : index
    %32 = vector.load %arg2[%c16, %c0_10] : memref<272x128xf32, #tpu.memory_space<vmem>>, vector<32x80xf32>
    %cst_11 = arith.constant dense<0.000000e+00> : vector<8x80xf32>
    %33 = tpu.matmul %29, %32, %cst_11 {dimension_numbers = #tpu.dot_dimension_numbers<[1], [0], [0], [1], [0, 0, 1, 1], [], []>} : vector<8x32xf32>, vector<32x80xf32>, vector<8x80xf32> -> vector<8x80xf32>
    %34 = vector.extract_strided_slice %33 {offsets = [0, 64], sizes = [8, 16], strides = [1, 1]} : vector<8x80xf32> to vector<8x16xf32>
    %35 = vector.broadcast %18 : vector<1x16xf32> to vector<8x16xf32>
    %36 = arith.addf %34, %35 : vector<8x16xf32>
    %c48 = arith.constant 48 : index
    %c0_12 = arith.constant 0 : index
    %37 = vector.load %arg2[%c48, %c0_12] : memref<272x128xf32, #tpu.memory_space<vmem>>, vector<32x64xf32>
    %c80 = arith.constant 80 : index
    %c0_13 = arith.constant 0 : index
    %38 = vector.load %arg2[%c80, %c0_13] : memref<272x128xf32, #tpu.memory_space<vmem>>, vector<32x64xf32>
    %39 = vector.extract_strided_slice %33 {offsets = [0, 0], sizes = [8, 64], strides = [1, 1]} : vector<8x80xf32> to vector<8x64xf32>
    %cst_14 = arith.constant dense<0.000000e+00> : vector<8x64xf32>
    %40 = tpu.matmul %30, %37, %cst_14 {dimension_numbers = #tpu.dot_dimension_numbers<[1], [0], [0], [1], [0, 0, 1, 1], [], []>} : vector<8x32xf32>, vector<32x64xf32>, vector<8x64xf32> -> vector<8x64xf32>
    %41 = arith.addf %39, %40 : vector<8x64xf32>
    %cst_15 = arith.constant dense<0.000000e+00> : vector<8x64xf32>
    %42 = tpu.matmul %31, %38, %cst_15 {dimension_numbers = #tpu.dot_dimension_numbers<[1], [0], [0], [1], [0, 0, 1, 1], [], []>} : vector<8x32xf32>, vector<32x64xf32>, vector<8x64xf32> -> vector<8x64xf32>
    %43 = arith.addf %41, %42 : vector<8x64xf32>
    %44 = vector.broadcast %19 : vector<1x64xf32> to vector<8x64xf32>
    %45 = arith.addf %43, %44 : vector<8x64xf32>
    %cst_16 = arith.constant 0.000000e+00 : f32
    %46 = vector.broadcast %cst_16 : f32 to vector<8x64xf32>
    %47 = arith.maximumf %45, %46 : vector<8x64xf32>
    %c112 = arith.constant 112 : index
    %c0_17 = arith.constant 0 : index
    %48 = vector.load %arg2[%c112, %c0_17] : memref<272x128xf32, #tpu.memory_space<vmem>>, vector<64x32xf32>
    %cst_18 = arith.constant dense<0.000000e+00> : vector<8x32xf32>
    %49 = tpu.matmul %47, %48, %cst_18 {dimension_numbers = #tpu.dot_dimension_numbers<[1], [0], [0], [1], [0, 0, 1, 1], [], []>} : vector<8x64xf32>, vector<64x32xf32>, vector<8x32xf32> -> vector<8x32xf32>
    %50 = vector.broadcast %20 : vector<1x32xf32> to vector<8x32xf32>
    %51 = arith.addf %49, %50 : vector<8x32xf32>
    %cst_19 = arith.constant 0.000000e+00 : f32
    %52 = vector.broadcast %cst_19 : f32 to vector<8x32xf32>
    %53 = arith.maximumf %51, %52 : vector<8x32xf32>
    %c0_20 = arith.constant 0 : index
    %c0_21 = arith.constant 0 : index
    %54 = vector.load %arg1[%c0_20, %c0_21] : memref<16x32xf32, #tpu.memory_space<vmem>>, vector<16x32xf32>
    %cst_22 = arith.constant dense<0.000000e+00> : vector<8x32xf32>
    %55 = tpu.matmul %36, %54, %cst_22 {dimension_numbers = #tpu.dot_dimension_numbers<[1], [0], [0], [1], [0, 0, 1, 1], [], []>} : vector<8x16xf32>, vector<16x32xf32>, vector<8x32xf32> -> vector<8x32xf32>
    %cst_23 = arith.constant dense<0.000000e+00> : vector<8x8xf32>
    %56 = tpu.matmul %53, %55, %cst_23 {dimension_numbers = #tpu.dot_dimension_numbers<[1], [1], [0], [0], [0, 0, 1, 0], [], []>} : vector<8x32xf32>, vector<8x32xf32>, vector<8x8xf32> -> vector<8x8xf32>
    %cst_24 = arith.constant dense<0xFF800000> : vector<8xf32>
    %57 = vector.multi_reduction <maximumf>, %56, %cst_24 [1] : vector<8x8xf32> to vector<8xf32>
    %58 = vector.shape_cast %57 : vector<8xf32> to vector<8x1xf32>
    %59 = vector.broadcast %58 : vector<8x1xf32> to vector<8x8xf32>
    %60 = arith.subf %56, %59 : vector<8x8xf32>
    %61 = math.exp %60 : vector<8x8xf32>
    %cst_25 = arith.constant dense<0.000000e+00> : vector<8xf32>
    %62 = vector.multi_reduction <add>, %61, %cst_25 [1] : vector<8x8xf32> to vector<8xf32>
    %63 = vector.shape_cast %62 : vector<8xf32> to vector<8x1xf32>
    %64 = tpu.reciprocal %63 {approx = true} : vector<8x1xf32> -> vector<8x1xf32>
    %65 = vector.broadcast %64 : vector<8x1xf32> to vector<8x8xf32>
    %66 = arith.mulf %61, %65 : vector<8x8xf32>
    %cst_26 = arith.constant dense<0.000000e+00> : vector<8x32xf32>
    %67 = tpu.matmul %66, %53, %cst_26 {dimension_numbers = #tpu.dot_dimension_numbers<[1], [0], [0], [1], [0, 0, 1, 1], [], []>} : vector<8x8xf32>, vector<8x32xf32>, vector<8x32xf32> -> vector<8x32xf32>
    %c176 = arith.constant 176 : index
    %c0_27 = arith.constant 0 : index
    %68 = vector.load %arg2[%c176, %c0_27] : memref<272x128xf32, #tpu.memory_space<vmem>>, vector<32x32xf32>
    %c208 = arith.constant 208 : index
    %c0_28 = arith.constant 0 : index
    %69 = vector.load %arg2[%c208, %c0_28] : memref<272x128xf32, #tpu.memory_space<vmem>>, vector<32x32xf32>
    %cst_29 = arith.constant dense<0.000000e+00> : vector<8x32xf32>
    %70 = tpu.matmul %67, %68, %cst_29 {dimension_numbers = #tpu.dot_dimension_numbers<[1], [0], [0], [1], [0, 0, 1, 1], [], []>} : vector<8x32xf32>, vector<32x32xf32>, vector<8x32xf32> -> vector<8x32xf32>
    %cst_30 = arith.constant dense<0.000000e+00> : vector<8x32xf32>
    %71 = tpu.matmul %53, %69, %cst_30 {dimension_numbers = #tpu.dot_dimension_numbers<[1], [0], [0], [1], [0, 0, 1, 1], [], []>} : vector<8x32xf32>, vector<32x32xf32>, vector<8x32xf32> -> vector<8x32xf32>
    %72 = arith.addf %70, %71 : vector<8x32xf32>
    %73 = vector.broadcast %21 : vector<1x32xf32> to vector<8x32xf32>
    %74 = arith.addf %72, %73 : vector<8x32xf32>
    %75 = math.tanh %74 : vector<8x32xf32>
    %c240 = arith.constant 240 : index
    %c0_31 = arith.constant 0 : index
    %76 = vector.load %arg2[%c240, %c0_31] : memref<272x128xf32, #tpu.memory_space<vmem>>, vector<32x16xf32>
    %cst_32 = arith.constant dense<0.000000e+00> : vector<8x16xf32>
    %77 = tpu.matmul %75, %76, %cst_32 {dimension_numbers = #tpu.dot_dimension_numbers<[1], [0], [0], [1], [0, 0, 1, 1], [], []>} : vector<8x32xf32>, vector<32x16xf32>, vector<8x16xf32> -> vector<8x16xf32>
    %78 = vector.broadcast %22 : vector<1x16xf32> to vector<8x16xf32>
    %79 = arith.addf %77, %78 : vector<8x16xf32>
    %cst_33 = arith.constant 0.000000e+00 : f32
    %80 = vector.broadcast %cst_33 : f32 to vector<8x64xf32>
    %81 = tpu.concatenate %36, %53, %79, %80 in 1 : vector<8x16xf32>, vector<8x32xf32>, vector<8x16xf32>, vector<8x64xf32> -> vector<8x128xf32>
    %c0_34 = arith.constant 0 : index
    %c0_35 = arith.constant 0 : index
    %82 = vector.load %arg3[%c0_34, %c0_35] : memref<8x128xf32, #tpu.memory_space<vmem>>, vector<8x128xf32>
    tpu.vector_store %arg3[%c0_34, %c0_35], %81 {strides = array<i32>} : memref<8x128xf32, #tpu.memory_space<vmem>>, vector<8x128xf32>,
    return
  }
}

</mosaic_0001>

<llo_original>
// kernel: kg_model_forward.1
$region0: #{kg_model_forward.1}
  #allocation0 [shape = 'u32[]', space=smem, size = 0x4, offset = 0x4, fixed_abs, tag = 'smem constant byte address 0x4 - core index']
  #allocation1 [shape = 'u32[144,128]{1,0:T(1,128)}', space=vmem, size = 0x12000, scoped, tag = 'internal scratch']
  %s0 = inlined_call_operand.vmem [shape: f32[24,1024], index: 0, kind: input, shape index: {}]
  %s1 = inlined_call_operand.vmem [shape: f32[16,32], index: 1, kind: input, shape index: {}]
  %s2 = inlined_call_operand.vmem [shape: f32[272,128], index: 2, kind: input, shape index: {}]
  %s3 = inlined_call_operand.vmem [shape: f32[8,128], index: 3, kind: output, shape index: {}]
  %s4 = sld [smem:[#allocation0]]
  $region22: #{kg_model_forward.1} parent=0
    _
  %s6 = ssub.s32 1, %s4
  %s7 = scalar_select 0, %s6, %s4
  // Predicated region
  $region2: #{kg_model_forward.1} parent=0 // pred_check
    _
  $region3: #{kg_model_forward.1} parent=0 // pred_check_branch
    %9 = sbr.rel (0) target = $region5
  $region4: #{kg_model_forward.1} parent=0 // pred_region
    _
  $region5: #{kg_model_forward.1} parent=0 // pred_fallthru
    _
  // Predicated region
  $region6: #{kg_model_forward.1} parent=0 // pred_check
    _
  $region7: #{kg_model_forward.1} parent=0 // pred_check_branch
    %11 = sbr.rel (0) target = $region9
  $region8: #{kg_model_forward.1} parent=0 // pred_region
    _
  $region9: #{kg_model_forward.1} parent=0 // pred_fallthru
    _
  // Predicated region
  $region10: #{kg_model_forward.1} parent=0 // pred_check
    _
  $region11: #{kg_model_forward.1} parent=0 // pred_check_branch
    %13 = sbr.rel (0) target = $region13
  $region12: #{kg_model_forward.1} parent=0 // pred_region
    _
  $region13: #{kg_model_forward.1} parent=0 // pred_fallthru
    _
  %v14 = vld [vmem:[%s0] sm:$0xff]
  %v15 = vld [vmem:[%s0 + $0x8] sm:$0xff]
  %v16 = vld [vmem:[%s0 + $0x10] sm:$0xff]
  %v17 = vld [vmem:[%s0 + $0x18] sm:$0xff]
  %v18 = vld [vmem:[%s0 + $0x20] sm:$0xff]
  %v19 = vld [vmem:[%s0 + $0x28] sm:$0xff]
  %v20 = vld [vmem:[%s0 + $0x30] sm:$0xff]
  %v21 = vld [vmem:[%s0 + $0x38] sm:$0xff]
  %v22 = vld [vmem:[%s0 + $0x40] sm:$0xff]
  %v23 = vld [vmem:[%s0 + $0x48] sm:$0xff]
  %v24 = vld [vmem:[%s0 + $0x50] sm:$0xff]
  %v25 = vld [vmem:[%s0 + $0x58] sm:$0xff]
  %v26 = vld [vmem:[%s0 + $0x60] sm:$0xff]
  %v27 = vld [vmem:[%s0 + $0x68] sm:$0xff]
  %v28 = vld [vmem:[%s0 + $0x70] sm:$0xff]
  %v29 = vld [vmem:[%s0 + $0x78] sm:$0xff]
  %v30 = vld [vmem:[%s0 + $0x80] sm:$0xff]
  %v31 = vld [vmem:[%s0 + $0x88] sm:$0xff]
  %v32 = vld [vmem:[%s0 + $0x90] sm:$0xff]
  %v33 = vld [vmem:[%s0 + $0x98] sm:$0xff]
  %v34 = vld [vmem:[%s0 + $0xa0] sm:$0xff]
  %v35 = vld [vmem:[%s0 + $0xa8] sm:$0xff]
  %v36 = vld [vmem:[%s0 + $0xb0] sm:$0xff]
  %v37 = vld [vmem:[%s0 + $0xb8] sm:$0xff]
  %v38 = vadd.f32 %v14, %v15
  %39 = vadd.xlane.f32.xlu0 %v38
  %v40 = vpop.xlane.xlu0 %39
  %v41 = vadd.f32 %v22, %v23
  %42 = vadd.xlane.f32.xlu0 %v41
  %v43 = vpop.xlane.xlu0 %42
  %v44 = vadd.f32 %v30, %v31
  %45 = vadd.xlane.f32.xlu0 %v44
  %v46 = vpop.xlane.xlu0 %45
  %v47 = vadd.f32 %v16, %v17
  %48 = vadd.xlane.f32.xlu0 %v47
  %v49 = vpop.xlane.xlu0 %48
  %v50 = vadd.f32 %v24, %v25
  %51 = vadd.xlane.f32.xlu0 %v50
  %v52 = vpop.xlane.xlu0 %51
  %v53 = vadd.f32 %v32, %v33
  %54 = vadd.xlane.f32.xlu0 %v53
  %v55 = vpop.xlane.xlu0 %54
  %v56 = vadd.f32 %v18, %v19
  %57 = vadd.xlane.f32.xlu0 %v56
  %v58 = vpop.xlane.xlu0 %57
  %v59 = vadd.f32 %v26, %v27
  %60 = vadd.xlane.f32.xlu0 %v59
  %v61 = vpop.xlane.xlu0 %60
  %v62 = vadd.f32 %v34, %v35
  %63 = vadd.xlane.f32.xlu0 %v62
  %v64 = vpop.xlane.xlu0 %63
  %v65 = vadd.f32 %v20, %v21
  %66 = vadd.xlane.f32.xlu0 %v65
  %v67 = vpop.xlane.xlu0 %66
  %v68 = vadd.f32 %v28, %v29
  %69 = vadd.xlane.f32.xlu0 %v68
  %v70 = vpop.xlane.xlu0 %69
  %v71 = vadd.f32 %v36, %v37
  %72 = vadd.xlane.f32.xlu0 %v71
  %v73 = vpop.xlane.xlu0 %72
  %vm74 = vcmask 7168
  %v75 = vsel %vm74, %v40, %v49
  %v76 = vsel %vm74, %v43, %v52
  %v77 = vsel %vm74, %v46, %v55
  %vm78 = vcmask 15360
  %v79 = vsel %vm78, %v75, %v58
  %v80 = vsel %vm78, %v76, %v61
  %v81 = vsel %vm78, %v77, %v64
  %vm82 = vcmask 23552
  %v83 = vsel %vm82, %v79, %v67
  %v84 = vsel %vm82, %v80, %v70
  %v85 = vsel %vm82, %v81, %v73
  %v86 = vmul.f32 %v83, 0.00390625
  %v87 = vmul.f32 %v84, 0.00390625
  %v88 = vmul.f32 %v85, 0.00390625
  %v89 = vld [vmem:[%s2 + $0x8] sm:$0xff]
  %v90 = vld [vmem:[%s2] sm:$0xf]
  %v91 = vlaneseq
  %v92 = vshrl.u32 %v91, 7
  %v93 = vsub.s32 0, %v92
  %v94 = vrot.slane %v89, %v93
  %vm95 = vcmask 31744
  %v97 = vsel %vm95, %v86, 0
  %v100 = vsel %vm95, %v87, 0
  %v103 = vsel %vm95, %v88, 0
  %vm105 = vcmask 1043456
  %v107 = vsel %vm105, %v90, 0
  %109 = vmatprep.subr.mxu0 0.0
  %110 = vmatpush1.msra.mxu0 %v107
  %111 = vmatprep.subr.mxu0 0.0
  %112 = vmatpush1.msra.mxu0 0.0
  %113 = vmatprep.subr.mxu0 0.0
  %114 = vmatpush1.msra.mxu0 0.0
  %115 = vmatprep.subr.mxu0 0.0
  %116 = vmatpush1.msra.mxu0 0.0
  %117 = vmatprep.subr.mxu0 0.0
  %118 = vmatpush1.msra.mxu0 0.0
  %119 = vmatprep.subr.mxu0 0.0
  %120 = vmatpush1.msra.mxu0 0.0
  %121 = vmatprep.subr.mxu0 0.0
  %122 = vmatpush1.msra.mxu0 0.0
  %123 = vmatprep.subr.mxu0 0.0
  %124 = vmatpush1.msra.mxu0 0.0
  %125 = vmatprep.subr.mxu0 0.0
  %126 = vmatpush1.msra.mxu0 0.0
  %127 = vmatprep.subr.mxu0 0.0
  %128 = vmatpush1.msra.mxu0 0.0
  %129 = vmatprep.subr.mxu0 0.0
  %130 = vmatpush1.msra.mxu0 0.0
  %131 = vmatprep.subr.mxu0 0.0
  %132 = vmatpush1.msra.mxu0 0.0
  %133 = vmatprep.subr.mxu0 0.0
  %134 = vmatpush1.msra.mxu0 0.0
  %135 = vmatprep.subr.mxu0 0.0
  %136 = vmatpush1.msra.mxu0 0.0
  %137 = vmatprep.subr.mxu0 0.0
  %138 = vmatpush1.msra.mxu0 0.0
  %139 = vmatprep.subr.mxu0 0.0
  %140 = vmatpush1.msra.mxu0 0.0
  %141 = vmatprep.subr.mxu0 0.0
  %142 = vmatpush1.msra.mxu0 0.0
  %143 = vmatprep.subr.mxu0 0.0
  %144 = vmatpush1.msra.mxu0 0.0
  %145 = vmatprep.subr.mxu0 0.0
  %146 = vmatpush1.msra.mxu0 0.0
  %147 = vmatprep.subr.mxu0 0.0
  %148 = vmatpush1.msra.mxu0 0.0
  %149 = vmatprep.subr.mxu0 0.0
  %150 = vmatpush1.msra.mxu0 0.0
  %151 = vmatprep.subr.mxu0 0.0
  %152 = vmatpush1.msra.mxu0 0.0
  %153 = vmatprep.subr.mxu0 0.0
  %154 = vmatpush1.msra.mxu0 0.0
  %155 = vmatprep.subr.mxu0 0.0
  %156 = vmatpush1.msra.mxu0 0.0
  %157 = vmatprep.subr.mxu0 0.0
  %158 = vmatpush1.msra.mxu0 0.0
  %159 = vmatprep.subr.mxu0 0.0
  %160 = vmatpush1.msra.mxu0 0.0
  %161 = vmatprep.subr.mxu0 0.0
  %162 = vmatpush1.msra.mxu0 0.0
  %163 = vmatprep.subr.mxu0 0.0
  %164 = vmatpush1.msra.mxu0 0.0
  %165 = vmatprep.subr.mxu0 0.0
  %166 = vmatpush1.msra.mxu0 0.0
  %167 = vmatprep.subr.mxu0 0.0
  %168 = vmatpush1.msra.mxu0 0.0
  %169 = vmatprep.subr.mxu0 0.0
  %170 = vmatpush1.msra.mxu0 0.0
  %171 = vmatprep.subr.mxu0 0.0
  %172 = vmatpush1.msra.mxu0 0.0
  %173 = vmatprep.mubr.f32.mxu0 0.0
  %174 = vmatmul.mubr.f32.gmra.mrb[0].mxu0 %v97
  %v175 = vpop.f32.mrb[0].mxu0
  %v176 = vadd.f32 %v94, %v175
  %v177 = vpop.f32.mrb[0].mxu0
  %178 = vmatprep.mubr.f32.mxu0 0.0
  %179 = vmatmul.mubr.f32.gmra.mrb[0].mxu0 %v100
  %v180 = vpop.f32.mrb[0].mxu0
  %v181 = vadd.f32 %v94, %v180
  %v182 = vpop.f32.mrb[0].mxu0
  %183 = vmatprep.mubr.f32.mxu0 0.0
  %184 = vmatmul.mubr.f32.gmra.mrb[0].mxu0 %v103
  %v185 = vpop.f32.mrb[0].mxu0
  %v186 = vadd.f32 %v94, %v185
  %v187 = vpop.f32.mrb[0].mxu0
  %188 = vdwg.mxu0
  %v189 = vmax.f32 %v176, 0.0
  %v190 = vmax.f32 %v181, 0.0
  %v191 = vmax.f32 %v186, 0.0
  %v192 = vld [vmem:[%s2 + $0x10] sm:$0xff]
  %v193 = vld [vmem:[%s2 + $0x18] sm:$0xff]
  %v194 = vld [vmem:[%s2 + $0x20] sm:$0xff]
  %v195 = vld [vmem:[%s2 + $0x28] sm:$0xff]
  %vm196 = vcmask 261120
  %v198 = vsel %vm196, %v189, 0
  %200 = vmatprep.subr.mxu0 0.0
  %201 = vmatpush1.msra.mxu0 %v192
  %202 = vmatprep.subr.mxu0 0.0
  %203 = vmatpush1.msra.mxu0 %v193
  %204 = vmatprep.subr.mxu0 0.0
  %205 = vmatpush1.msra.mxu0 %v194
  %206 = vmatprep.subr.mxu0 0.0
  %207 = vmatpush1.msra.mxu0 %v195
  %208 = vmatprep.subr.mxu0 0.0
  %209 = vmatpush1.msra.mxu0 0.0
  %210 = vmatprep.subr.mxu0 0.0
  %211 = vmatpush1.msra.mxu0 0.0
  %212 = vmatprep.subr.mxu0 0.0
  %213 = vmatpush1.msra.mxu0 0.0
  %214 = vmatprep.subr.mxu0 0.0
  %215 = vmatpush1.msra.mxu0 0.0
  %216 = vmatprep.subr.mxu0 0.0
  %217 = vmatpush1.msra.mxu0 0.0
  %218 = vmatprep.subr.mxu0 0.0
  %219 = vmatpush1.msra.mxu0 0.0
  %220 = vmatprep.subr.mxu0 0.0
  %221 = vmatpush1.msra.mxu0 0.0
  %222 = vmatprep.subr.mxu0 0.0
  %223 = vmatpush1.msra.mxu0 0.0
  %224 = vmatprep.subr.mxu0 0.0
  %225 = vmatpush1.msra.mxu0 0.0
  %226 = vmatprep.subr.mxu0 0.0
  %227 = vmatpush1.msra.mxu0 0.0
  %228 = vmatprep.subr.mxu0 0.0
  %229 = vmatpush1.msra.mxu0 0.0
  %230 = vmatprep.subr.mxu0 0.0
  %231 = vmatpush1.msra.mxu0 0.0
  %232 = vmatprep.subr.mxu0 0.0
  %233 = vmatpush1.msra.mxu0 0.0
  %234 = vmatprep.subr.mxu0 0.0
  %235 = vmatpush1.msra.mxu0 0.0
  %236 = vmatprep.subr.mxu0 0.0
  %237 = vmatpush1.msra.mxu0 0.0
  %238 = vmatprep.subr.mxu0 0.0
  %239 = vmatpush1.msra.mxu0 0.0
  %240 = vmatprep.subr.mxu0 0.0
  %241 = vmatpush1.msra.mxu0 0.0
  %242 = vmatprep.subr.mxu0 0.0
  %243 = vmatpush1.msra.mxu0 0.0
  %244 = vmatprep.subr.mxu0 0.0
  %245 = vmatpush1.msra.mxu0 0.0
  %246 = vmatprep.subr.mxu0 0.0
  %247 = vmatpush1.msra.mxu0 0.0
  %248 = vmatprep.subr.mxu0 0.0
  %249 = vmatpush1.msra.mxu0 0.0
  %250 = vmatprep.subr.mxu0 0.0
  %251 = vmatpush1.msra.mxu0 0.0
  %252 = vmatprep.subr.mxu0 0.0
  %253 = vmatpush1.msra.mxu0 0.0
  %254 = vmatprep.subr.mxu0 0.0
  %255 = vmatpush1.msra.mxu0 0.0
  %256 = vmatprep.subr.mxu0 0.0
  %257 = vmatpush1.msra.mxu0 0.0
  %258 = vmatprep.subr.mxu0 0.0
  %259 = vmatpush1.msra.mxu0 0.0
  %260 = vmatprep.subr.mxu0 0.0
  %261 = vmatpush1.msra.mxu0 0.0
  %262 = vmatprep.subr.mxu0 0.0
  %263 = vmatpush1.msra.mxu0 0.0
  %264 = vmatprep.mubr.f32.mxu0 0.0
  %265 = vmatmul.mubr.f32.gmra.mrb[0].mxu0 %v198
  %v266 = vpop.f32.mrb[0].mxu0
  %v267 = vadd.f32 0.0, %v266
  %v268 = vpop.f32.mrb[0].mxu0
  %269 = vdwg.mxu0
  %v270 = vlaneseq
  %v271 = vshrl.u32 %v270, 7
  %v272 = vsub.s32 1, %v271
  %v273 = vrot.slane %v89, %v272
  %275 = vrot.lane.b32.xlu0 %v273, 64
  %v276 = vpop.permute.xlu0 %275
  %v278 = vadd.f32 %v267, %v276
  %v279 = vld [vmem:[%s2 + $0x30] sm:$0xff]
  %v280 = vld [vmem:[%s2 + $0x38] sm:$0xff]
  %v281 = vld [vmem:[%s2 + $0x40] sm:$0xff]
  %v282 = vld [vmem:[%s2 + $0x48] sm:$0xff]
  %v283 = vld [vmem:[%s2 + $0x50] sm:$0xff]
  %v284 = vld [vmem:[%s2 + $0x58] sm:$0xff]
  %v285 = vld [vmem:[%s2 + $0x60] sm:$0xff]
  %v286 = vld [vmem:[%s2 + $0x68] sm:$0xff]
  %v288 = vsel %vm196, %v190, 0
  %290 = vmatprep.subr.mxu0 0.0
  %291 = vmatpush1.msra.mxu0 %v279
  %292 = vmatprep.subr.mxu0 0.0
  %293 = vmatpush1.msra.mxu0 %v280
  %294 = vmatprep.subr.mxu0 0.0
  %295 = vmatpush1.msra.mxu0 %v281
  %296 = vmatprep.subr.mxu0 0.0
  %297 = vmatpush1.msra.mxu0 %v282
  %298 = vmatprep.subr.mxu0 0.0
  %299 = vmatpush1.msra.mxu0 0.0
  %300 = vmatprep.subr.mxu0 0.0
  %301 = vmatpush1.msra.mxu0 0.0
  %302 = vmatprep.subr.mxu0 0.0
  %303 = vmatpush1.msra.mxu0 0.0
  %304 = vmatprep.subr.mxu0 0.0
  %305 = vmatpush1.msra.mxu0 0.0
  %306 = vmatprep.subr.mxu0 0.0
  %307 = vmatpush1.msra.mxu0 0.0
  %308 = vmatprep.subr.mxu0 0.0
  %309 = vmatpush1.msra.mxu0 0.0
  %310 = vmatprep.subr.mxu0 0.0
  %311 = vmatpush1.msra.mxu0 0.0
  %312 = vmatprep.subr.mxu0 0.0
  %313 = vmatpush1.msra.mxu0 0.0
  %314 = vmatprep.subr.mxu0 0.0
  %315 = vmatpush1.msra.mxu0 0.0
  %316 = vmatprep.subr.mxu0 0.0
  %317 = vmatpush1.msra.mxu0 0.0
  %318 = vmatprep.subr.mxu0 0.0
  %319 = vmatpush1.msra.mxu0 0.0
  %320 = vmatprep.subr.mxu0 0.0
  %321 = vmatpush1.msra.mxu0 0.0
  %322 = vmatprep.subr.mxu0 0.0
  %323 = vmatpush1.msra.mxu0 0.0
  %324 = vmatprep.subr.mxu0 0.0
  %325 = vmatpush1.msra.mxu0 0.0
  %326 = vmatprep.subr.mxu0 0.0
  %327 = vmatpush1.msra.mxu0 0.0
  %328 = vmatprep.subr.mxu0 0.0
  %329 = vmatpush1.msra.mxu0 0.0
  %330 = vmatprep.subr.mxu0 0.0
  %331 = vmatpush1.msra.mxu0 0.0
  %332 = vmatprep.subr.mxu0 0.0
  %333 = vmatpush1.msra.mxu0 0.0
  %334 = vmatprep.subr.mxu0 0.0
  %335 = vmatpush1.msra.mxu0 0.0
  %336 = vmatprep.subr.mxu0 0.0
  %337 = vmatpush1.msra.mxu0 0.0
  %338 = vmatprep.subr.mxu0 0.0
  %339 = vmatpush1.msra.mxu0 0.0
  %340 = vmatprep.subr.mxu0 0.0
  %341 = vmatpush1.msra.mxu0 0.0
  %342 = vmatprep.subr.mxu0 0.0
  %343 = vmatpush1.msra.mxu0 0.0
  %344 = vmatprep.subr.mxu0 0.0
  %345 = vmatpush1.msra.mxu0 0.0
  %346 = vmatprep.subr.mxu0 0.0
  %347 = vmatpush1.msra.mxu0 0.0
  %348 = vmatprep.subr.mxu0 0.0
  %349 = vmatpush1.msra.mxu0 0.0
  %350 = vmatprep.subr.mxu0 0.0
  %351 = vmatpush1.msra.mxu0 0.0
  %352 = vmatprep.subr.mxu0 0.0
  %353 = vmatpush1.msra.mxu0 0.0
  %354 = vmatprep.mubr.f32.mxu0 0.0
  %355 = vmatmul.mubr.f32.gmra.mrb[0].mxu0 %v288
  %v356 = vpop.f32.mrb[0].mxu0
  %v357 = vadd.f32 0.0, %v356
  %v358 = vpop.f32.mrb[0].mxu0
  %359 = vdwg.mxu0
  %v360 = vadd.f32 %v267, %v357
  %v362 = vsel %vm196, %v191, 0
  %364 = vmatprep.subr.mxu0 0.0
  %365 = vmatpush1.msra.mxu0 %v283
  %366 = vmatprep.subr.mxu0 0.0
  %367 = vmatpush1.msra.mxu0 %v284
  %368 = vmatprep.subr.mxu0 0.0
  %369 = vmatpush1.msra.mxu0 %v285
  %370 = vmatprep.subr.mxu0 0.0
  %371 = vmatpush1.msra.mxu0 %v286
  %372 = vmatprep.subr.mxu0 0.0
  %373 = vmatpush1.msra.mxu0 0.0
  %374 = vmatprep.subr.mxu0 0.0
  %375 = vmatpush1.msra.mxu0 0.0
  %376 = vmatprep.subr.mxu0 0.0
  %377 = vmatpush1.msra.mxu0 0.0
  %378 = vmatprep.subr.mxu0 0.0
  %379 = vmatpush1.msra.mxu0 0.0
  %380 = vmatprep.subr.mxu0 0.0
  %381 = vmatpush1.msra.mxu0 0.0
  %382 = vmatprep.subr.mxu0 0.0
  %383 = vmatpush1.msra.mxu0 0.0
  %384 = vmatprep.subr.mxu0 0.0
  %385 = vmatpush1.msra.mxu0 0.0
  %386 = vmatprep.subr.mxu0 0.0
  %387 = vmatpush1.msra.mxu0 0.0
  %388 = vmatprep.subr.mxu0 0.0
  %389 = vmatpush1.msra.mxu0 0.0
  %390 = vmatprep.subr.mxu0 0.0
  %391 = vmatpush1.msra.mxu0 0.0
  %392 = vmatprep.subr.mxu0 0.0
  %393 = vmatpush1.msra.mxu0 0.0
  %394 = vmatprep.subr.mxu0 0.0
  %395 = vmatpush1.msra.mxu0 0.0
  %396 = vmatprep.subr.mxu0 0.0
  %397 = vmatpush1.msra.mxu0 0.0
  %398 = vmatprep.subr.mxu0 0.0
  %399 = vmatpush1.msra.mxu0 0.0
  %400 = vmatprep.subr.mxu0 0.0
  %401 = vmatpush1.msra.mxu0 0.0
  %402 = vmatprep.subr.mxu0 0.0
  %403 = vmatpush1.msra.mxu0 0.0
  %404 = vmatprep.subr.mxu0 0.0
  %405 = vmatpush1.msra.mxu0 0.0
  %406 = vmatprep.subr.mxu0 0.0
  %407 = vmatpush1.msra.mxu0 0.0
  %408 = vmatprep.subr.mxu0 0.0
  %409 = vmatpush1.msra.mxu0 0.0
  %410 = vmatprep.subr.mxu0 0.0
  %411 = vmatpush1.msra.mxu0 0.0
  %412 = vmatprep.subr.mxu0 0.0
  %413 = vmatpush1.msra.mxu0 0.0
  %414 = vmatprep.subr.mxu0 0.0
  %415 = vmatpush1.msra.mxu0 0.0
  %416 = vmatprep.subr.mxu0 0.0
  %417 = vmatpush1.msra.mxu0 0.0
  %418 = vmatprep.subr.mxu0 0.0
  %419 = vmatpush1.msra.mxu0 0.0
  %420 = vmatprep.subr.mxu0 0.0
  %421 = vmatpush1.msra.mxu0 0.0
  %422 = vmatprep.subr.mxu0 0.0
  %423 = vmatpush1.msra.mxu0 0.0
  %424 = vmatprep.subr.mxu0 0.0
  %425 = vmatpush1.msra.mxu0 0.0
  %426 = vmatprep.subr.mxu0 0.0
  %427 = vmatpush1.msra.mxu0 0.0
  %428 = vmatprep.mubr.f32.mxu0 0.0
  %429 = vmatmul.mubr.f32.gmra.mrb[0].mxu0 %v362
  %v430 = vpop.f32.mrb[0].mxu0
  %v431 = vadd.f32 0.0, %v430
  %v432 = vpop.f32.mrb[0].mxu0
  %433 = vdwg.mxu0
  %v434 = vadd.f32 %v360, %v431
  %v435 = vlaneseq
  %v436 = vshrl.u32 %v435, 7
  %v437 = vsub.s32 2, %v436
  %v438 = vrot.slane %v89, %v437
  %v439 = vadd.f32 %v434, %v438
  %v440 = vmax.f32 %v439, 0.0
  %v441 = vld [vmem:[%s2 + $0x70] sm:$0xff]
  %v442 = vld [vmem:[%s2 + $0x78] sm:$0xff]
  %v443 = vld [vmem:[%s2 + $0x80] sm:$0xff]
  %v444 = vld [vmem:[%s2 + $0x88] sm:$0xff]
  %v445 = vld [vmem:[%s2 + $0x90] sm:$0xff]
  %v446 = vld [vmem:[%s2 + $0x98] sm:$0xff]
  %v447 = vld [vmem:[%s2 + $0xa0] sm:$0xff]
  %v448 = vld [vmem:[%s2 + $0xa8] sm:$0xff]
  %v449 = vlaneseq
  %v450 = vshrl.u32 %v449, 7
  %v451 = vsub.s32 3, %v450
  %v452 = vrot.slane %v89, %v451
  %vm453 = vcmask 523264
  %v455 = vsel %vm453, %v440, 0
  %457 = vmatprep.subr.mxu0 0.0
  %458 = vmatpush1.msra.mxu0 %v441
  %459 = vmatprep.subr.mxu0 0.0
  %460 = vmatpush1.msra.mxu0 %v442
  %461 = vmatprep.subr.mxu0 0.0
  %462 = vmatpush1.msra.mxu0 %v443
  %463 = vmatprep.subr.mxu0 0.0
  %464 = vmatpush1.msra.mxu0 %v444
  %465 = vmatprep.subr.mxu0 0.0
  %466 = vmatpush1.msra.mxu0 %v445
  %467 = vmatprep.subr.mxu0 0.0
  %468 = vmatpush1.msra.mxu0 %v446
  %469 = vmatprep.subr.mxu0 0.0
  %470 = vmatpush1.msra.mxu0 %v447
  %471 = vmatprep.subr.mxu0 0.0
  %472 = vmatpush1.msra.mxu0 %v448
  %473 = vmatprep.subr.mxu0 0.0
  %474 = vmatpush1.msra.mxu0 0.0
  %475 = vmatprep.subr.mxu0 0.0
  %476 = vmatpush1.msra.mxu0 0.0
  %477 = vmatprep.subr.mxu0 0.0
  %478 = vmatpush1.msra.mxu0 0.0
  %479 = vmatprep.subr.mxu0 0.0
  %480 = vmatpush1.msra.mxu0 0.0
  %481 = vmatprep.subr.mxu0 0.0
  %482 = vmatpush1.msra.mxu0 0.0
  %483 = vmatprep.subr.mxu0 0.0
  %484 = vmatpush1.msra.mxu0 0.0
  %485 = vmatprep.subr.mxu0 0.0
  %486 = vmatpush1.msra.mxu0 0.0
  %487 = vmatprep.subr.mxu0 0.0
  %488 = vmatpush1.msra.mxu0 0.0
  %489 = vmatprep.subr.mxu0 0.0
  %490 = vmatpush1.msra.mxu0 0.0
  %491 = vmatprep.subr.mxu0 0.0
  %492 = vmatpush1.msra.mxu0 0.0
  %493 = vmatprep.subr.mxu0 0.0
  %494 = vmatpush1.msra.mxu0 0.0
  %495 = vmatprep.subr.mxu0 0.0
  %496 = vmatpush1.msra.mxu0 0.0
  %497 = vmatprep.subr.mxu0 0.0
  %498 = vmatpush1.msra.mxu0 0.0
  %499 = vmatprep.subr.mxu0 0.0
  %500 = vmatpush1.msra.mxu0 0.0
  %501 = vmatprep.subr.mxu0 0.0
  %502 = vmatpush1.msra.mxu0 0.0
  %503 = vmatprep.subr.mxu0 0.0
  %504 = vmatpush1.msra.mxu0 0.0
  %505 = vmatprep.subr.mxu0 0.0
  %506 = vmatpush1.msra.mxu0 0.0
  %507 = vmatprep.subr.mxu0 0.0
  %508 = vmatpush1.msra.mxu0 0.0
  %509 = vmatprep.subr.mxu0 0.0
  %510 = vmatpush1.msra.mxu0 0.0
  %511 = vmatprep.subr.mxu0 0.0
  %512 = vmatpush1.msra.mxu0 0.0
  %513 = vmatprep.subr.mxu0 0.0
  %514 = vmatpush1.msra.mxu0 0.0
  %515 = vmatprep.subr.mxu0 0.0
  %516 = vmatpush1.msra.mxu0 0.0
  %517 = vmatprep.subr.mxu0 0.0
  %518 = vmatpush1.msra.mxu0 0.0
  %519 = vmatprep.subr.mxu0 0.0
  %520 = vmatpush1.msra.mxu0 0.0
  %521 = vmatprep.mubr.f32.mxu0 0.0
  %522 = vmatmul.mubr.f32.gmra.mrb[0].mxu0 %v455
  %v523 = vpop.f32.mrb[0].mxu0
  %v524 = vadd.f32 %v452, %v523
  %v525 = vpop.f32.mrb[0].mxu0
  %526 = vdwg.mxu0
  %v527 = vmax.f32 %v524, 0.0
  %v528 = vld [vmem:[%s1] sm:$0xff]
  %v529 = vld [vmem:[%s1 + $0x8] sm:$0xff]
  %531 = vrot.lane.b32.xlu0 %v278, 64
  %v532 = vpop.permute.xlu0 %531
  %vm533 = vcmask 130048
  %v534 = vsel %vm533, %v532, 0
  %536 = vmatprep.subr.mxu0 0.0
  %537 = vmatpush1.msra.mxu0 %v528
  %538 = vmatprep.subr.mxu0 0.0
  %539 = vmatpush1.msra.mxu0 %v529
  %540 = vmatprep.subr.mxu0 0.0
  %541 = vmatpush1.msra.mxu0 0.0
  %542 = vmatprep.subr.mxu0 0.0
  %543 = vmatpush1.msra.mxu0 0.0
  %544 = vmatprep.subr.mxu0 0.0
  %545 = vmatpush1.msra.mxu0 0.0
  %546 = vmatprep.subr.mxu0 0.0
  %547 = vmatpush1.msra.mxu0 0.0
  %548 = vmatprep.subr.mxu0 0.0
  %549 = vmatpush1.msra.mxu0 0.0
  %550 = vmatprep.subr.mxu0 0.0
  %551 = vmatpush1.msra.mxu0 0.0
  %552 = vmatprep.subr.mxu0 0.0
  %553 = vmatpush1.msra.mxu0 0.0
  %554 = vmatprep.subr.mxu0 0.0
  %555 = vmatpush1.msra.mxu0 0.0
  %556 = vmatprep.subr.mxu0 0.0
  %557 = vmatpush1.msra.mxu0 0.0
  %558 = vmatprep.subr.mxu0 0.0
  %559 = vmatpush1.msra.mxu0 0.0
  %560 = vmatprep.subr.mxu0 0.0
  %561 = vmatpush1.msra.mxu0 0.0
  %562 = vmatprep.subr.mxu0 0.0
  %563 = vmatpush1.msra.mxu0 0.0
  %564 = vmatprep.subr.mxu0 0.0
  %565 = vmatpush1.msra.mxu0 0.0
  %566 = vmatprep.subr.mxu0 0.0
  %567 = vmatpush1.msra.mxu0 0.0
  %568 = vmatprep.subr.mxu0 0.0
  %569 = vmatpush1.msra.mxu0 0.0
  %570 = vmatprep.subr.mxu0 0.0
  %571 = vmatpush1.msra.mxu0 0.0
  %572 = vmatprep.subr.mxu0 0.0
  %573 = vmatpush1.msra.mxu0 0.0
  %574 = vmatprep.subr.mxu0 0.0
  %575 = vmatpush1.msra.mxu0 0.0
  %576 = vmatprep.subr.mxu0 0.0
  %577 = vmatpush1.msra.mxu0 0.0
  %578 = vmatprep.subr.mxu0 0.0
  %579 = vmatpush1.msra.mxu0 0.0
  %580 = vmatprep.subr.mxu0 0.0
  %581 = vmatpush1.msra.mxu0 0.0
  %582 = vmatprep.subr.mxu0 0.0
  %583 = vmatpush1.msra.mxu0 0.0
  %584 = vmatprep.subr.mxu0 0.0
  %585 = vmatpush1.msra.mxu0 0.0
  %586 = vmatprep.subr.mxu0 0.0
  %587 = vmatpush1.msra.mxu0 0.0
  %588 = vmatprep.subr.mxu0 0.0
  %589 = vmatpush1.msra.mxu0 0.0
  %590 = vmatprep.subr.mxu0 0.0
  %591 = vmatpush1.msra.mxu0 0.0
  %592 = vmatprep.subr.mxu0 0.0
  %593 = vmatpush1.msra.mxu0 0.0
  %594 = vmatprep.subr.mxu0 0.0
  %595 = vmatpush1.msra.mxu0 0.0
  %596 = vmatprep.subr.mxu0 0.0
  %597 = vmatpush1.msra.mxu0 0.0
  %598 = vmatprep.subr.mxu0 0.0
  %599 = vmatpush1.msra.mxu0 0.0
  %600 = vmatprep.mubr.f32.mxu0 0.0
  %601 = vmatmul.mubr.f32.gmra.mrb[0].mxu0 %v534
  %v602 = vpop.f32.mrb[0].mxu0
  %v603 = vadd.f32 0.0, %v602
  %v604 = vpop.f32.mrb[0].mxu0
  %605 = vdwg.mxu0
  %v607 = vsel %vm196, %v527, 0
  %v610 = vsel %vm196, %v603, 0
  %612 = vmatprep.subr.mxu0 0.0
  %613 = vmatpush1.xpose.msra.mxu0 %v610
  %614 = vmatprep.subr.mxu0 0.0
  %615 = vmatpush1.xpose.msra.mxu0 0.0
  %616 = vmatprep.subr.mxu0 0.0
  %617 = vmatpush1.xpose.msra.mxu0 0.0
  %618 = vmatprep.subr.mxu0 0.0
  %619 = vmatpush1.xpose.msra.mxu0 0.0
  %620 = vmatprep.subr.mxu0 0.0
  %621 = vmatpush1.xpose.msra.mxu0 0.0
  %622 = vmatprep.subr.mxu0 0.0
  %623 = vmatpush1.xpose.msra.mxu0 0.0
  %624 = vmatprep.subr.mxu0 0.0
  %625 = vmatpush1.xpose.msra.mxu0 0.0
  %626 = vmatprep.subr.mxu0 0.0
  %627 = vmatpush1.xpose.msra.mxu0 0.0
  %628 = vmatprep.subr.mxu0 0.0
  %629 = vmatpush1.xpose.msra.mxu0 0.0
  %630 = vmatprep.subr.mxu0 0.0
  %631 = vmatpush1.xpose.msra.mxu0 0.0
  %632 = vmatprep.subr.mxu0 0.0
  %633 = vmatpush1.xpose.msra.mxu0 0.0
  %634 = vmatprep.subr.mxu0 0.0
  %635 = vmatpush1.xpose.msra.mxu0 0.0
  %636 = vmatprep.subr.mxu0 0.0
  %637 = vmatpush1.xpose.msra.mxu0 0.0
  %638 = vmatprep.subr.mxu0 0.0
  %639 = vmatpush1.xpose.msra.mxu0 0.0
  %640 = vmatprep.subr.mxu0 0.0
  %641 = vmatpush1.xpose.msra.mxu0 0.0
  %642 = vmatprep.subr.mxu0 0.0
  %643 = vmatpush1.xpose.msra.mxu0 0.0
  %644 = vmatprep.subr.mxu0 0.0
  %645 = vmatpush1.xpose.msra.mxu0 0.0
  %646 = vmatprep.subr.mxu0 0.0
  %647 = vmatpush1.xpose.msra.mxu0 0.0
  %648 = vmatprep.subr.mxu0 0.0
  %649 = vmatpush1.xpose.msra.mxu0 0.0
  %650 = vmatprep.subr.mxu0 0.0
  %651 = vmatpush1.xpose.msra.mxu0 0.0
  %652 = vmatprep.subr.mxu0 0.0
  %653 = vmatpush1.xpose.msra.mxu0 0.0
  %654 = vmatprep.subr.mxu0 0.0
  %655 = vmatpush1.xpose.msra.mxu0 0.0
  %656 = vmatprep.subr.mxu0 0.0
  %657 = vmatpush1.xpose.msra.mxu0 0.0
  %658 = vmatprep.subr.mxu0 0.0
  %659 = vmatpush1.xpose.msra.mxu0 0.0
  %660 = vmatprep.subr.mxu0 0.0
  %661 = vmatpush1.xpose.msra.mxu0 0.0
  %662 = vmatprep.subr.mxu0 0.0
  %663 = vmatpush1.xpose.msra.mxu0 0.0
  %664 = vmatprep.subr.mxu0 0.0
  %665 = vmatpush1.xpose.msra.mxu0 0.0
  %666 = vmatprep.subr.mxu0 0.0
  %667 = vmatpush1.xpose.msra.mxu0 0.0
  %668 = vmatprep.subr.mxu0 0.0
  %669 = vmatpush1.xpose.msra.mxu0 0.0
  %670 = vmatprep.subr.mxu0 0.0
  %671 = vmatpush1.xpose.msra.mxu0 0.0
  %672 = vmatprep.subr.mxu0 0.0
  %673 = vmatpush1.xpose.msra.mxu0 0.0
  %674 = vmatprep.subr.mxu0 0.0
  %675 = vmatpush1.xpose.msra.mxu0 0.0
  %676 = vmatprep.mubr.f32.mxu0 0.0
  %677 = vmatmul.mubr.f32.gmra.mrb[0].mxu0 %v607
  %v678 = vpop.f32.mrb[0].mxu0
  %v679 = vadd.f32 0.0, %v678
  %v680 = vpop.f32.mrb[0].mxu0
  %681 = vdwg.mxu0
  %vm682 = vcmask 64512
  %v683 = vsel %vm682, %v679, -inf
  %684 = vmax.xlane.f32.xlu0 %v683
  %v685 = vpop.xlane.xlu0 %684
  %v686 = vsub.f32 %v679, %v685
  %v687 = vmul.f32 %v686, 1.442695
  %v688 = vpow.pop %v687
  %v689 = vsel %vm682, %v688, 0.0
  %690 = vadd.xlane.f32.xlu0 %v689
  %v691 = vpop.xlane.xlu0 %690
  %v692 = vrcp.pop %v691
  %v693 = vmul.f32 %v688, %v692
  %v695 = vsel %vm682, %v693, 0
  %697 = vmatprep.subr.mxu0 0.0
  %698 = vmatpush1.msra.mxu0 %v527
  %699 = vmatprep.subr.mxu0 0.0
  %700 = vmatpush1.msra.mxu0 0.0
  %701 = vmatprep.subr.mxu0 0.0
  %702 = vmatpush1.msra.mxu0 0.0
  %703 = vmatprep.subr.mxu0 0.0
  %704 = vmatpush1.msra.mxu0 0.0
  %705 = vmatprep.subr.mxu0 0.0
  %706 = vmatpush1.msra.mxu0 0.0
  %707 = vmatprep.subr.mxu0 0.0
  %708 = vmatpush1.msra.mxu0 0.0
  %709 = vmatprep.subr.mxu0 0.0
  %710 = vmatpush1.msra.mxu0 0.0
  %711 = vmatprep.subr.mxu0 0.0
  %712 = vmatpush1.msra.mxu0 0.0
  %713 = vmatprep.subr.mxu0 0.0
  %714 = vmatpush1.msra.mxu0 0.0
  %715 = vmatprep.subr.mxu0 0.0
  %716 = vmatpush1.msra.mxu0 0.0
  %717 = vmatprep.subr.mxu0 0.0
  %718 = vmatpush1.msra.mxu0 0.0
  %719 = vmatprep.subr.mxu0 0.0
  %720 = vmatpush1.msra.mxu0 0.0
  %721 = vmatprep.subr.mxu0 0.0
  %722 = vmatpush1.msra.mxu0 0.0
  %723 = vmatprep.subr.mxu0 0.0
  %724 = vmatpush1.msra.mxu0 0.0
  %725 = vmatprep.subr.mxu0 0.0
  %726 = vmatpush1.msra.mxu0 0.0
  %727 = vmatprep.subr.mxu0 0.0
  %728 = vmatpush1.msra.mxu0 0.0
  %729 = vmatprep.subr.mxu0 0.0
  %730 = vmatpush1.msra.mxu0 0.0
  %731 = vmatprep.subr.mxu0 0.0
  %732 = vmatpush1.msra.mxu0 0.0
  %733 = vmatprep.subr.mxu0 0.0
  %734 = vmatpush1.msra.mxu0 0.0
  %735 = vmatprep.subr.mxu0 0.0
  %736 = vmatpush1.msra.mxu0 0.0
  %737 = vmatprep.subr.mxu0 0.0
  %738 = vmatpush1.msra.mxu0 0.0
  %739 = vmatprep.subr.mxu0 0.0
  %740 = vmatpush1.msra.mxu0 0.0
  %741 = vmatprep.subr.mxu0 0.0
  %742 = vmatpush1.msra.mxu0 0.0
  %743 = vmatprep.subr.mxu0 0.0
  %744 = vmatpush1.msra.mxu0 0.0
  %745 = vmatprep.subr.mxu0 0.0
  %746 = vmatpush1.msra.mxu0 0.0
  %747 = vmatprep.subr.mxu0 0.0
  %748 = vmatpush1.msra.mxu0 0.0
  %749 = vmatprep.subr.mxu0 0.0
  %750 = vmatpush1.msra.mxu0 0.0
  %751 = vmatprep.subr.mxu0 0.0
  %752 = vmatpush1.msra.mxu0 0.0
  %753 = vmatprep.subr.mxu0 0.0
  %754 = vmatpush1.msra.mxu0 0.0
  %755 = vmatprep.subr.mxu0 0.0
  %756 = vmatpush1.msra.mxu0 0.0
  %757 = vmatprep.subr.mxu0 0.0
  %758 = vmatpush1.msra.mxu0 0.0
  %759 = vmatprep.subr.mxu0 0.0
  %760 = vmatpush1.msra.mxu0 0.0
  %761 = vmatprep.mubr.f32.mxu0 0.0
  %762 = vmatmul.mubr.f32.gmra.mrb[0].mxu0 %v695
  %v763 = vpop.f32.mrb[0].mxu0
  %v764 = vadd.f32 0.0, %v763
  %v765 = vpop.f32.mrb[0].mxu0
  %766 = vdwg.mxu0
  %v767 = vld [vmem:[%s2 + $0xb0] sm:$0xff]
  %v768 = vld [vmem:[%s2 + $0xb8] sm:$0xff]
  %v769 = vld [vmem:[%s2 + $0xc0] sm:$0xff]
  %v770 = vld [vmem:[%s2 + $0xc8] sm:$0xff]
  %v771 = vld [vmem:[%s2 + $0xd0] sm:$0xff]
  %v772 = vld [vmem:[%s2 + $0xd8] sm:$0xff]
  %v773 = vld [vmem:[%s2 + $0xe0] sm:$0xff]
  %v774 = vld [vmem:[%s2 + $0xe8] sm:$0xff]
  %775 = vmatprep.subr.mxu0 0.0
  %776 = vmatpush1.msra.mxu0 %v771
  %777 = vmatprep.subr.mxu0 0.0
  %778 = vmatpush1.msra.mxu0 %v772
  %779 = vmatprep.subr.mxu0 0.0
  %780 = vmatpush1.msra.mxu0 %v773
  %781 = vmatprep.subr.mxu0 0.0
  %782 = vmatpush1.msra.mxu0 %v774
  %783 = vmatprep.subr.mxu0 0.0
  %784 = vmatpush1.msra.mxu0 0.0
  %785 = vmatprep.subr.mxu0 0.0
  %786 = vmatpush1.msra.mxu0 0.0
  %787 = vmatprep.subr.mxu0 0.0
  %788 = vmatpush1.msra.mxu0 0.0
  %789 = vmatprep.subr.mxu0 0.0
  %790 = vmatpush1.msra.mxu0 0.0
  %791 = vmatprep.subr.mxu0 0.0
  %792 = vmatpush1.msra.mxu0 0.0
  %793 = vmatprep.subr.mxu0 0.0
  %794 = vmatpush1.msra.mxu0 0.0
  %795 = vmatprep.subr.mxu0 0.0
  %796 = vmatpush1.msra.mxu0 0.0
  %797 = vmatprep.subr.mxu0 0.0
  %798 = vmatpush1.msra.mxu0 0.0
  %799 = vmatprep.subr.mxu0 0.0
  %800 = vmatpush1.msra.mxu0 0.0
  %801 = vmatprep.subr.mxu0 0.0
  %802 = vmatpush1.msra.mxu0 0.0
  %803 = vmatprep.subr.mxu0 0.0
  %804 = vmatpush1.msra.mxu0 0.0
  %805 = vmatprep.subr.mxu0 0.0
  %806 = vmatpush1.msra.mxu0 0.0
  %807 = vmatprep.subr.mxu0 0.0
  %808 = vmatpush1.msra.mxu0 0.0
  %809 = vmatprep.subr.mxu0 0.0
  %810 = vmatpush1.msra.mxu0 0.0
  %811 = vmatprep.subr.mxu0 0.0
  %812 = vmatpush1.msra.mxu0 0.0
  %813 = vmatprep.subr.mxu0 0.0
  %814 = vmatpush1.msra.mxu0 0.0
  %815 = vmatprep.subr.mxu0 0.0
  %816 = vmatpush1.msra.mxu0 0.0
  %817 = vmatprep.subr.mxu0 0.0
  %818 = vmatpush1.msra.mxu0 0.0
  %819 = vmatprep.subr.mxu0 0.0
  %820 = vmatpush1.msra.mxu0 0.0
  %821 = vmatprep.subr.mxu0 0.0
  %822 = vmatpush1.msra.mxu0 0.0
  %823 = vmatprep.subr.mxu0 0.0
  %824 = vmatpush1.msra.mxu0 0.0
  %825 = vmatprep.subr.mxu0 0.0
  %826 = vmatpush1.msra.mxu0 0.0
  %827 = vmatprep.subr.mxu0 0.0
  %828 = vmatpush1.msra.mxu0 0.0
  %829 = vmatprep.subr.mxu0 0.0
  %830 = vmatpush1.msra.mxu0 0.0
  %831 = vmatprep.subr.mxu0 0.0
  %832 = vmatpush1.msra.mxu0 0.0
  %833 = vmatprep.subr.mxu0 0.0
  %834 = vmatpush1.msra.mxu0 0.0
  %835 = vmatprep.subr.mxu0 0.0
  %836 = vmatpush1.msra.mxu0 0.0
  %837 = vmatprep.subr.mxu0 0.0
  %838 = vmatpush1.msra.mxu0 0.0
  %839 = vmatprep.mubr.f32.mxu0 0.0
  %840 = vmatmul.mubr.f32.gmra.mrb[0].mxu0 %v607
  %v841 = vpop.f32.mrb[0].mxu0
  %v842 = vadd.f32 0.0, %v841
  %v843 = vpop.f32.mrb[0].mxu0
  %844 = vdwg.mxu0
  %v846 = vsel %vm196, %v764, 0
  %848 = vmatprep.subr.mxu0 0.0
  %849 = vmatpush1.msra.mxu0 %v767
  %850 = vmatprep.subr.mxu0 0.0
  %851 = vmatpush1.msra.mxu0 %v768
  %852 = vmatprep.subr.mxu0 0.0
  %853 = vmatpush1.msra.mxu0 %v769
  %854 = vmatprep.subr.mxu0 0.0
  %855 = vmatpush1.msra.mxu0 %v770
  %856 = vmatprep.subr.mxu0 0.0
  %857 = vmatpush1.msra.mxu0 0.0
  %858 = vmatprep.subr.mxu0 0.0
  %859 = vmatpush1.msra.mxu0 0.0
  %860 = vmatprep.subr.mxu0 0.0
  %861 = vmatpush1.msra.mxu0 0.0
  %862 = vmatprep.subr.mxu0 0.0
  %863 = vmatpush1.msra.mxu0 0.0
  %864 = vmatprep.subr.mxu0 0.0
  %865 = vmatpush1.msra.mxu0 0.0
  %866 = vmatprep.subr.mxu0 0.0
  %867 = vmatpush1.msra.mxu0 0.0
  %868 = vmatprep.subr.mxu0 0.0
  %869 = vmatpush1.msra.mxu0 0.0
  %870 = vmatprep.subr.mxu0 0.0
  %871 = vmatpush1.msra.mxu0 0.0
  %872 = vmatprep.subr.mxu0 0.0
  %873 = vmatpush1.msra.mxu0 0.0
  %874 = vmatprep.subr.mxu0 0.0
  %875 = vmatpush1.msra.mxu0 0.0
  %876 = vmatprep.subr.mxu0 0.0
  %877 = vmatpush1.msra.mxu0 0.0
  %878 = vmatprep.subr.mxu0 0.0
  %879 = vmatpush1.msra.mxu0 0.0
  %880 = vmatprep.subr.mxu0 0.0
  %881 = vmatpush1.msra.mxu0 0.0
  %882 = vmatprep.subr.mxu0 0.0
  %883 = vmatpush1.msra.mxu0 0.0
  %884 = vmatprep.subr.mxu0 0.0
  %885 = vmatpush1.msra.mxu0 0.0
  %886 = vmatprep.subr.mxu0 0.0
  %887 = vmatpush1.msra.mxu0 0.0
  %888 = vmatprep.subr.mxu0 0.0
  %889 = vmatpush1.msra.mxu0 0.0
  %890 = vmatprep.subr.mxu0 0.0
  %891 = vmatpush1.msra.mxu0 0.0
  %892 = vmatprep.subr.mxu0 0.0
  %893 = vmatpush1.msra.mxu0 0.0
  %894 = vmatprep.subr.mxu0 0.0
  %895 = vmatpush1.msra.mxu0 0.0
  %896 = vmatprep.subr.mxu0 0.0
  %897 = vmatpush1.msra.mxu0 0.0
  %898 = vmatprep.subr.mxu0 0.0
  %899 = vmatpush1.msra.mxu0 0.0
  %900 = vmatprep.subr.mxu0 0.0
  %901 = vmatpush1.msra.mxu0 0.0
  %902 = vmatprep.subr.mxu0 0.0
  %903 = vmatpush1.msra.mxu0 0.0
  %904 = vmatprep.subr.mxu0 0.0
  %905 = vmatpush1.msra.mxu0 0.0
  %906 = vmatprep.subr.mxu0 0.0
  %907 = vmatpush1.msra.mxu0 0.0
  %908 = vmatprep.subr.mxu0 0.0
  %909 = vmatpush1.msra.mxu0 0.0
  %910 = vmatprep.subr.mxu0 0.0
  %911 = vmatpush1.msra.mxu0 0.0
  %912 = vmatprep.mubr.f32.mxu0 0.0
  %913 = vmatmul.mubr.f32.gmra.mrb[0].mxu0 %v846
  %v914 = vpop.f32.mrb[0].mxu0
  %v915 = vadd.f32 %v842, %v914
  %v916 = vpop.f32.mrb[0].mxu0
  %917 = vdwg.mxu0
  %v918 = vlaneseq
  %v919 = vshrl.u32 %v918, 7
  %v920 = vsub.s32 4, %v919
  %v921 = vrot.slane %v89, %v920
  %v922 = vadd.f32 %v915, %v921
  %v923 = vtanh.pop %v922
  %v924 = vld [vmem:[%s2 + $0xf0] sm:$0xff]
  %v925 = vld [vmem:[%s2 + $0xf8] sm:$0xff]
  %v926 = vld [vmem:[%s2 + $0x100] sm:$0xff]
  %v927 = vld [vmem:[%s2 + $0x108] sm:$0xff]
  %v928 = vlaneseq
  %v929 = vshrl.u32 %v928, 7
  %v930 = vsub.s32 5, %v929
  %v931 = vrot.slane %v89, %v930
  %v933 = vsel %vm196, %v923, 0
  %935 = vmatprep.subr.mxu0 0.0
  %936 = vmatpush1.msra.mxu0 %v924
  %937 = vmatprep.subr.mxu0 0.0
  %938 = vmatpush1.msra.mxu0 %v925
  %939 = vmatprep.subr.mxu0 0.0
  %940 = vmatpush1.msra.mxu0 %v926
  %941 = vmatprep.subr.mxu0 0.0
  %942 = vmatpush1.msra.mxu0 %v927
  %943 = vmatprep.subr.mxu0 0.0
  %944 = vmatpush1.msra.mxu0 0.0
  %945 = vmatprep.subr.mxu0 0.0
  %946 = vmatpush1.msra.mxu0 0.0
  %947 = vmatprep.subr.mxu0 0.0
  %948 = vmatpush1.msra.mxu0 0.0
  %949 = vmatprep.subr.mxu0 0.0
  %950 = vmatpush1.msra.mxu0 0.0
  %951 = vmatprep.subr.mxu0 0.0
  %952 = vmatpush1.msra.mxu0 0.0
  %953 = vmatprep.subr.mxu0 0.0
  %954 = vmatpush1.msra.mxu0 0.0
  %955 = vmatprep.subr.mxu0 0.0
  %956 = vmatpush1.msra.mxu0 0.0
  %957 = vmatprep.subr.mxu0 0.0
  %958 = vmatpush1.msra.mxu0 0.0
  %959 = vmatprep.subr.mxu0 0.0
  %960 = vmatpush1.msra.mxu0 0.0
  %961 = vmatprep.subr.mxu0 0.0
  %962 = vmatpush1.msra.mxu0 0.0
  %963 = vmatprep.subr.mxu0 0.0
  %964 = vmatpush1.msra.mxu0 0.0
  %965 = vmatprep.subr.mxu0 0.0
  %966 = vmatpush1.msra.mxu0 0.0
  %967 = vmatprep.subr.mxu0 0.0
  %968 = vmatpush1.msra.mxu0 0.0
  %969 = vmatprep.subr.mxu0 0.0
  %970 = vmatpush1.msra.mxu0 0.0
  %971 = vmatprep.subr.mxu0 0.0
  %972 = vmatpush1.msra.mxu0 0.0
  %973 = vmatprep.subr.mxu0 0.0
  %974 = vmatpush1.msra.mxu0 0.0
  %975 = vmatprep.subr.mxu0 0.0
  %976 = vmatpush1.msra.mxu0 0.0
  %977 = vmatprep.subr.mxu0 0.0
  %978 = vmatpush1.msra.mxu0 0.0
  %979 = vmatprep.subr.mxu0 0.0
  %980 = vmatpush1.msra.mxu0 0.0
  %981 = vmatprep.subr.mxu0 0.0
  %982 = vmatpush1.msra.mxu0 0.0
  %983 = vmatprep.subr.mxu0 0.0
  %984 = vmatpush1.msra.mxu0 0.0
  %985 = vmatprep.subr.mxu0 0.0
  %986 = vmatpush1.msra.mxu0 0.0
  %987 = vmatprep.subr.mxu0 0.0
  %988 = vmatpush1.msra.mxu0 0.0
  %989 = vmatprep.subr.mxu0 0.0
  %990 = vmatpush1.msra.mxu0 0.0
  %991 = vmatprep.subr.mxu0 0.0
  %992 = vmatpush1.msra.mxu0 0.0
  %993 = vmatprep.subr.mxu0 0.0
  %994 = vmatpush1.msra.mxu0 0.0
  %995 = vmatprep.subr.mxu0 0.0
  %996 = vmatpush1.msra.mxu0 0.0
  %997 = vmatprep.subr.mxu0 0.0
  %998 = vmatpush1.msra.mxu0 0.0
  %999 = vmatprep.mubr.f32.mxu0 0.0
  %1000 = vmatmul.mubr.f32.gmra.mrb[0].mxu0 %v933
  %v1001 = vpop.f32.mrb[0].mxu0
  %v1002 = vadd.f32 %v931, %v1001
  %v1003 = vpop.f32.mrb[0].mxu0
  %1004 = vdwg.mxu0
  %1006 = vrot.lane.b32.xlu0 %v527, 16
  %v1007 = vpop.permute.xlu0 %1006
  %1010 = vrot.lane.b32.xlu0 %v1002, 48
  %v1011 = vpop.permute.xlu0 %1010
  %v1013 = vsel %vm533, %v532, %v1007
  %vm1014 = vcmask 392192
  %v1015 = vsel %vm1014, %v1013, %v1011
  %v1016 = vsel %vm453, %v1015, 0.0
  %1017 = vst [vmem:[%s3] sm:$0xff] %v1016
  // Predicated region
  $region14: #{kg_model_forward.1} parent=0 // pred_check
    _
  $region15: #{kg_model_forward.1} parent=0 // pred_check_branch
    %1019 = sbr.rel (0) target = $region17
  $region16: #{kg_model_forward.1} parent=0 // pred_region
    _
  $region17: #{kg_model_forward.1} parent=0 // pred_fallthru
    _
  // Predicated region
  $region18: #{kg_model_forward.1} parent=0 // pred_check
    _
  $region19: #{kg_model_forward.1} parent=0 // pred_check_branch
    %1021 = sbr.rel (0) target = $region21
  $region20: #{kg_model_forward.1} parent=0 // pred_region
    _
  $region21: #{kg_model_forward.1} parent=0 // pred_fallthru
    _

</llo_original>
